<compile_context>
chip_gen: v5e
topology: v5e:2x2
jax: 0.10.0
libtpu: 0.0.40
codegen_flags: <defaults>
</compile_context>

<pallas_src>
import jax
import jax.numpy as jnp
from jax.experimental import pallas as pl
from jax.experimental.pallas import tpu as pltpu

IN_FEATURES = 1024
OUT_FEATURES = 1
DEFAULT_TB = 512  # batch rows per tile; 2 MiB f32, safe on all chips


def dhead_kernel(x_ref, w_ref, b_ref, o_ref):
    # x_ref: (TB, 1024) f32 in VMEM
    # w_ref: (1, 1024)  f32 in VMEM (nn.Linear weight, shape (out, in))
    # b_ref: (1, 1)     f32 in SMEM (loop-invariant scalar)
    # o_ref: (TB, 1)    f32 in VMEM
    x = x_ref[...]                       # (TB, 1024)
    w = w_ref[...]                       # (1, 1024)
    # Linear(1024 -> 1): elementwise mul (VPU) + lane reduction (XLU).
    # Avoids an unaligned (1024, 1) transposed weight tile and the MXU,
    # which would be 127/128 wasted at N=1.
    logits = jnp.sum(x * w, axis=-1, keepdims=True) + b_ref[0, 0]  # (TB, 1)
    o_ref[...] = jax.nn.sigmoid(logits)


def dhead_forward(x_nchw, weight, bias, tb=DEFAULT_TB):
    """x_nchw: (B, C, H, W) with C*H*W == 1024. Returns (B, 1) f32."""
    B = x_nchw.shape[0]
    x_flat = x_nchw.reshape(B, -1).astype(jnp.float32)          # nn.Flatten
    assert x_flat.shape[1] == IN_FEATURES
    b2d = bias.reshape(1, 1).astype(jnp.float32)

    # Batch tile: full batch for tiny B, otherwise a multiple-of-8 tile
    # (<= tb) so block shapes satisfy the (8, 128) layout rule; the tail
    # tile (B % TB != 0) is handled by Pallas's out-of-bounds masking.
    TB = B if B <= tb else tb
    grid = (pl.cdiv(B, TB),)

    return pl.pallas_call(
        dhead_kernel,
        out_shape=jax.ShapeDtypeStruct((B, OUT_FEATURES), jnp.float32),
        grid_spec=pltpu.PrefetchScalarGridSpec(
            num_scalar_prefetch=0,
            grid=grid,
            in_specs=[
                # x: tiled over batch.
                pl.BlockSpec((TB, IN_FEATURES), lambda i: (i, 0)),
                # weight: constant block index -> DMA'd once, VMEM-resident.
                pl.BlockSpec((OUT_FEATURES, IN_FEATURES), lambda i: (0, 0)),
                # bias: scalar, lives in SMEM.
                pl.BlockSpec(memory_space=pltpu.MemorySpace.SMEM),
            ],
            out_specs=pl.BlockSpec((TB, OUT_FEATURES), lambda i: (i, 0)),
        ),
        compiler_params=pltpu.CompilerParams(
            dimension_semantics=("parallel",)
        ),
    )(x_flat, weight.astype(jnp.float32), b2d)


def reference_forward(x_nchw, weight, bias):
    B = x_nchw.shape[0]
    x_flat = x_nchw.reshape(B, -1).astype(jnp.float32)
    return jax.nn.sigmoid(x_flat @ weight.T.astype(jnp.float32)
                          + bias.astype(jnp.float32)[None, :])


if __name__ == "__main__":
    key = jax.random.PRNGKey(0)
    kx, kw, kb, kx2 = jax.random.split(key, 4)

    # Deterministic synthetic parameters (nn.Linear(1024, 1) shapes).
    weight = jax.random.normal(kw, (OUT_FEATURES, IN_FEATURES), jnp.float32) * 0.02
    bias = jax.random.normal(kb, (OUT_FEATURES,), jnp.float32) * 0.02

    # Small shapes consistent with Linear(1024, 1): B=2, C=4, H=W=16 -> 1024.
    x = jax.random.normal(kx, (2, 4, 16, 16), dtype=jnp.float32)
    out = dhead_forward(x, weight, bias)
    out = jax.block_until_ready(out)
    ref = reference_forward(x, weight, bias)
    assert out.shape == (2, 1)
    assert jnp.allclose(out, ref, atol=1e-5, rtol=1e-5), (out, ref)

    # Exercise the multi-tile path (including a masked tail tile: 20 = 16 + 4).
    x2 = jax.random.normal(kx2, (20, 4, 16, 16), dtype=jnp.float32)
    out2 = jax.block_until_ready(dhead_forward(x2, weight, bias, tb=16))
    ref2 = reference_forward(x2, weight, bias)
    assert out2.shape == (20, 1)
    assert jnp.allclose(out2, ref2, atol=1e-5, rtol=1e-5), (out2, ref2)

    print("KERNEL_OK")
</pallas_src>

<mosaic_0001>
module attributes {stable_mosaic.version = 11 : i64} {
  func.func @dhead_kernel(%arg0: i32, %arg1: memref<2x1024xf32, #tpu.memory_space<vmem>>, %arg2: memref<1x1024xf32, #tpu.memory_space<vmem>>, %arg3: memref<1x1xf32, #tpu.memory_space<smem>>, %arg4: memref<2x1xf32, #tpu.memory_space<vmem>>) attributes {dimension_semantics = [#tpu.dimension_semantics<parallel>], iteration_bounds = array<i64: 1>, scalar_prefetch = 0 : i64, scratch_operands = 0 : i64, tpu.core_type = #tpu.core_type<tc>, window_params = [{transform_indices = @transform_0, window_bounds = array<i64: 2, 1024>}, {pipeline_mode = #tpu.pipeline_mode<synchronous>, transform_indices = @transform_1, window_bounds = array<i64: 1, 1024>}, {transform_indices = @transform_2, window_bounds = array<i64: 1, 1>}, {transform_indices = @transform_3, window_bounds = array<i64: 2, 1>}]} {
    %c0 = arith.constant 0 : index
    %c0_0 = arith.constant 0 : index
    %0 = vector.load %arg1[%c0, %c0_0] : memref<2x1024xf32, #tpu.memory_space<vmem>>, vector<2x1024xf32>
    %c0_1 = arith.constant 0 : index
    %c0_2 = arith.constant 0 : index
    %1 = vector.load %arg2[%c0_1, %c0_2] : memref<1x1024xf32, #tpu.memory_space<vmem>>, vector<1x1024xf32>
    %2 = vector.broadcast %1 : vector<1x1024xf32> to vector<2x1024xf32>
    %3 = arith.mulf %0, %2 : vector<2x1024xf32>
    %cst = arith.constant dense<0.000000e+00> : vector<2xf32>
    %4 = vector.multi_reduction <add>, %3, %cst [1] : vector<2x1024xf32> to vector<2xf32>
    %5 = vector.shape_cast %4 : vector<2xf32> to vector<2x1xf32>
    %c0_3 = arith.constant 0 : index
    %c0_4 = arith.constant 0 : index
    %6 = memref.load %arg3[%c0_3, %c0_4] : memref<1x1xf32, #tpu.memory_space<smem>>
    %7 = vector.broadcast %6 : f32 to vector<2x1xf32>
    %8 = arith.addf %5, %7 : vector<2x1xf32>
    %9 = arith.negf %8 : vector<2x1xf32>
    %10 = math.exp %9 : vector<2x1xf32>
    %cst_5 = arith.constant 1.000000e+00 : f32
    %11 = vector.broadcast %cst_5 : f32 to vector<2x1xf32>
    %12 = arith.addf %11, %10 : vector<2x1xf32>
    %13 = arith.divf %11, %12 : vector<2x1xf32>
    %c0_6 = arith.constant 0 : index
    %c0_7 = arith.constant 0 : index
    %14 = vector.load %arg4[%c0_6, %c0_7] : memref<2x1xf32, #tpu.memory_space<vmem>>, vector<2x1xf32>
    tpu.vector_store %arg4[%c0_6, %c0_7], %13 {strides = array<i32>} : memref<2x1xf32, #tpu.memory_space<vmem>>, vector<2x1xf32>,
    return
  }
  func.func @transform_0(%arg0: i32) -> (i32, i32) {
    %c0_i32 = arith.constant 0 : i32
    %c0_i32_0 = arith.constant 0 : i32
    return %arg0, %c0_i32 : i32, i32
  }
  func.func @transform_1(%arg0: i32) -> (i32, i32) {
    %c0_i32 = arith.constant 0 : i32
    %c0_i32_0 = arith.constant 0 : i32
    %c0_i32_1 = arith.constant 0 : i32
    return %c0_i32, %c0_i32_0 : i32, i32
  }
  func.func @transform_2(%arg0: i32) -> (i32, i32) {
    %c0_i32 = arith.constant 0 : i32
    %c0_i32_0 = arith.constant 0 : i32
    %c0_i32_1 = arith.constant 0 : i32
    return %c0_i32, %c0_i32_0 : i32, i32
  }
  func.func @transform_3(%arg0: i32) -> (i32, i32) {
    %c0_i32 = arith.constant 0 : i32
    %c0_i32_0 = arith.constant 0 : i32
    return %arg0, %c0_i32 : i32, i32
  }
}

</mosaic_0001>

<llo_original>
// kernel: tpu_custom_call.1
$region0: #{tpu_custom_call.1}
  #allocation0 [shape = 'u32[]', space=smem, size = 0x4, offset = 0x4, fixed_abs, tag = 'smem constant byte address 0x4 - core index']
  #allocation1 [shape = 'u32[72,128]{1,0:T(1,128)}', space=vmem, size = 0x9000, scoped, tag = 'internal scratch']
  #allocation2 [shape = 'f32[1,1]{1,0:T(1,128)S(6)}', space=smem, size = 0x200, scoped, tag = 'scoped memory for tpu_custom_call.1']
  %s0 = inlined_call_operand.hbm [shape: f32[2,1024], index: 0, kind: input, shape index: {}]
  %s1 = inlined_call_operand.hbm [shape: f32[1,1024], index: 1, kind: input, shape index: {}]
  %s2 = inlined_call_operand.<no memory space> [shape: f32[1,1], index: 2, kind: input, shape index: {}]
  %s3 = inlined_call_operand.vmem [shape: f32[2,1], index: 3, kind: output, shape index: {}]
  %s4 = sld [smem:[#allocation0]]
  $region30: #{tpu_custom_call.1} parent=0
    _
  %s6 = ssub.s32 1, %s4
  %s7 = scalar_select 0, %s6, %s4
  %8 = sst [smem:[#allocation2]] %s2
  $region1: #{tpu_custom_call.1} parent=0
    #allocation3 [shape = 'u8[8192]{0}', space=vmem, size = 0x2000, scoped, tag = 'input window, operand 0, single buffered']
    #allocation4 [shape = 's32[1]{0}', space=sflag, size = 0x4, scoped, tag = 'scoped memory for tpu_custom_call.1']
    #allocation5 [shape = 'u8[4096]{0}', space=vmem, size = 0x1000, scoped, tag = 'input window, operand 1, single buffered']
    #allocation6 [shape = 's32[1]{0}', space=sflag, size = 0x4, scoped, tag = 'scoped memory for tpu_custom_call.1']
    %9 = vsyncpa [#allocation4], 0
    %10 = vsyncpa [#allocation6], 0
    // Predicated region
    $region2: #{tpu_custom_call.1} parent=1 // pred_check
      _
    $region3: #{tpu_custom_call.1} parent=1 // pred_check_branch
      %12 = sbr.rel (0) target = $region5
    $region4: #{tpu_custom_call.1} parent=1 // pred_region
      %14 = vsyncadd [#allocation4], 0
      %s16 = sshll.u32 %s0, 4
      %s17 = int_to_ptr.hbm [resolvable:$true] %s16
      %s18 = sshll.u32 [#allocation3], 4
      %s19 = int_to_ptr.vmem [resolvable:$true] %s18
      %21 = dma.hbm_to_vmem [thread:$0]  %s17, 256, %s19, [#allocation4]
    $region5: #{tpu_custom_call.1} parent=1 // pred_fallthru
      _
    // Predicated region
    $region6: #{tpu_custom_call.1} parent=1 // pred_check
      _
    $region7: #{tpu_custom_call.1} parent=1 // pred_check_branch
      %23 = sbr.rel (0) target = $region9
    $region8: #{tpu_custom_call.1} parent=1 // pred_region
      %25 = vsyncadd [#allocation6], 0
      %s27 = sshll.u32 %s1, 4
      %s28 = int_to_ptr.hbm [resolvable:$true] %s27
      %s29 = sshll.u32 [#allocation5], 4
      %s30 = int_to_ptr.vmem [resolvable:$true] %s29
      %32 = dma.hbm_to_vmem [thread:$0]  %s28, 128, %s30, [#allocation6]
    $region9: #{tpu_custom_call.1} parent=1 // pred_fallthru
      _
    // Predicated region
    $region10: #{tpu_custom_call.1} parent=1 // pred_check
      _
    $region11: #{tpu_custom_call.1} parent=1 // pred_check_branch
      %34 = sbr.rel (0) target = $region13
    $region12: #{tpu_custom_call.1} parent=1 // pred_region
      _
    $region13: #{tpu_custom_call.1} parent=1 // pred_fallthru
      _
    // Predicated region
    $region14: #{tpu_custom_call.1} parent=1 // pred_check
      _
    $region15: #{tpu_custom_call.1} parent=1 // pred_check_branch
      %36 = sbr.rel (0) target = $region17
    $region16: #{tpu_custom_call.1} parent=1 // pred_region
      %38 = dma.done [#allocation4], 256
    $region17: #{tpu_custom_call.1} parent=1 // pred_fallthru
      _
    // Predicated region
    $region18: #{tpu_custom_call.1} parent=1 // pred_check
      _
    $region19: #{tpu_custom_call.1} parent=1 // pred_check_branch
      %40 = sbr.rel (0) target = $region21
    $region20: #{tpu_custom_call.1} parent=1 // pred_region
      %42 = dma.done [#allocation6], 128
    $region21: #{tpu_custom_call.1} parent=1 // pred_fallthru
      _
    %v43 = vld [vmem:[#allocation3] sm:$0xff]
    %v44 = vld [vmem:[#allocation3 + $0x8] sm:$0xff]
    %v45 = vld [vmem:[#allocation5] sm:$0xff]
    %v47 = vperm.slane %v45, 0
    %v48 = vperm.slane %v45, 1
    %v49 = vperm.slane %v45, 2
    %v50 = vperm.slane %v45, 3
    %v51 = vperm.slane %v45, 4
    %v52 = vperm.slane %v45, 5
    %v53 = vperm.slane %v45, 6
    %v54 = vperm.slane %v45, 7
    %v55 = vrot.slane %v48, 6
    %v56 = vrot.slane %v49, 4
    %v57 = vrot.slane %v50, 2
    %v58 = vrot.slane %v52, 6
    %v59 = vrot.slane %v53, 4
    %v60 = vrot.slane %v54, 2
    %vm61 = vcmask 1041408
    %v62 = vsel %vm61, %v47, %v55
    %vm63 = vcmask 1045508
    %v64 = vsel %vm63, %v56, %v57
    %vm65 = vcmask 1043456
    %v66 = vsel %vm65, %v62, %v64
    %v67 = vsel %vm61, %v51, %v58
    %v68 = vsel %vm63, %v59, %v60
    %v69 = vsel %vm65, %v67, %v68
    %v72 = vmul.f32 %v43, %v66
    %v73 = vmul.f32 %v44, %v69
    %76 = vst [vmem:[#allocation1] ss:$4 sm:$0xff] %v72
    %s77 = scalar_lea.vmem [#allocation1], 32
    %78 = vst [vmem:[%s77] ss:$4 sm:$0xff] %v73
    %v79 = vld.sshfl [vmem:[#allocation1] sm:$0xff pattern:$0x73625140]
    %v80 = vld.sshfl [vmem:[#allocation1 + $0x8] sm:$0xff pattern:$0x73625140]
    %v81 = vld.sshfl [vmem:[#allocation1 + $0x10] sm:$0xff pattern:$0x73625140]
    %v82 = vld.sshfl [vmem:[#allocation1 + $0x18] sm:$0xff pattern:$0x73625140]
    %v83 = vld.sshfl [vmem:[#allocation1 + $0x20] sm:$0xff pattern:$0x73625140]
    %v84 = vld.sshfl [vmem:[#allocation1 + $0x28] sm:$0xff pattern:$0x73625140]
    %v85 = vld.sshfl [vmem:[#allocation1 + $0x30] sm:$0xff pattern:$0x73625140]
    %v86 = vld.sshfl [vmem:[#allocation1 + $0x38] sm:$0xff pattern:$0x73625140]
    %v95 = vsel %vm61, %v79, 0.0
    %v96 = vsel %vm61, %v80, 0.0
    %v97 = vadd.f32 %v95, %v96
    %v98 = vsel %vm61, %v81, 0.0
    %v99 = vadd.f32 %v97, %v98
    %v100 = vsel %vm61, %v82, 0.0
    %v101 = vadd.f32 %v99, %v100
    %v102 = vsel %vm61, %v83, 0.0
    %v103 = vadd.f32 %v101, %v102
    %v104 = vsel %vm61, %v84, 0.0
    %v105 = vadd.f32 %v103, %v104
    %v106 = vsel %vm61, %v85, 0.0
    %v107 = vadd.f32 %v105, %v106
    %v108 = vsel %vm61, %v86, 0.0
    %v109 = vadd.f32 %v107, %v108
    %110 = vadd.xlane.f32.xlu0 %v109
    %v111 = vpop.xlane.xlu0 %110
    %s112 = sld [smem:[#allocation2]]
    %v113 = vstv %s112
    %v114 = vadd.f32 %v111, %v113
    %v115 = vxor.u32 %v114, 2147483648
    %v116 = vmul.f32 %v115, 1.442695
    %v117 = vpow.pop %v116
    %v118 = vadd.f32 %v117, 1.0
    %v119 = vrcp.pop %v118
    %v120 = vmul.f32 %v118, %v119
    %v121 = vsub.f32 1.0, %v120
    %v122 = vmul.f32 %v119, %v121
    %v123 = vadd.f32 %v119, %v122
    %vm124 = vweird.f32 %v118
    %vm125 = vweird.f32 %v119
    %vm126 = vmor %vm124, %vm125
    %v127 = vsel %vm126, %v119, %v123
    %v128 = vand.u32 2147483647, %v118
    %vm129 = vcmp.eq.f32.partialorder %v128, 8.507059e+37
    %v130 = vand.u32 %v118, 2147483648
    %v131 = vor.u32 1.1754944e-38, %v130
    %v132 = vsel %vm129, %v131, %v127
    %v133 = vmul.f32 1.0, %v132
    %vm134 = vcmask 1024
    %135 = vst.msk [vmem:[%s3] sm:$0x3] %vm134, %v133
    // Predicated region
    $region22: #{tpu_custom_call.1} parent=1 // pred_check
      _
    $region23: #{tpu_custom_call.1} parent=1 // pred_check_branch
      %137 = sbr.rel (0) target = $region25
    $region24: #{tpu_custom_call.1} parent=1 // pred_region
      _
    $region25: #{tpu_custom_call.1} parent=1 // pred_fallthru
      _
    // Predicated region
    $region26: #{tpu_custom_call.1} parent=1 // pred_check
      _
    $region27: #{tpu_custom_call.1} parent=1 // pred_check_branch
      %139 = sbr.rel (0) target = $region29
    $region28: #{tpu_custom_call.1} parent=1 // pred_region
      _
    $region29: #{tpu_custom_call.1} parent=1 // pred_fallthru
      _
    %140 = vsyncpa [#allocation4], 1
    %141 = vsyncpa [#allocation6], 1

</llo_original>
